<compile_context>
chip_gen: v5e
topology: v5e:2x2
jax: 0.10.0
libtpu: 0.0.40
codegen_flags: <defaults>
</compile_context>

<pallas_src>
import jax
import jax.numpy as jnp
from jax import lax
from jax.experimental import pallas as pl
from jax.experimental.pallas import tpu as pltpu


def _round_up(x, m):
    return ((x + m - 1) // m) * m


def _make_lstm_kernel(*, t_chunk, last_steps, n_chunks, b_pad, hw, gate_stride,
                      unroll, mxu_dtype):
    """Builds the chunked LSTM recurrence kernel.

    Ref shapes (per grid step s over time chunks):
      x_ref   : (t_chunk*b_pad, D)     time-major, batch-flattened input chunk (bf16)
      w_ih_ref: (D, G)                 input->gates weights, VMEM-resident (bf16)
      w_hh_ref: (hw, G)                hidden->gates weights, VMEM-resident (bf16)
      b_ref   : (1, G)                 combined bias b_ih + b_hh (f32)
      out_ref : (t_chunk*b_pad, hw)    h_t for every step of the chunk (f32)
      h_sc/c_sc: (b_pad, hw)           recurrent state carried across chunks (f32)
      xw_sc   : (t_chunk*b_pad, G)     hoisted x @ W_ih^T + b for the chunk (f32)
    """
    cast_lhs = mxu_dtype != jnp.float32

    def kernel(x_ref, w_ih_ref, w_hh_ref, b_ref, out_ref, h_sc, c_sc, xw_sc):
        s = pl.program_id(0)

        @pl.when(s == 0)
        def _():
            h_sc[...] = jnp.zeros_like(h_sc)
            c_sc[...] = jnp.zeros_like(c_sc)

        # ---- hoisted input projection: one big bf16 MXU matmul per chunk ----
        xw_sc[...] = (
            jnp.dot(x_ref[...], w_ih_ref[...], preferred_element_type=jnp.float32)
            + b_ref[...]
        )

        w_hh = w_hh_ref[...]          # resident across the serial time loop

        def run_steps(n_steps, unroll_n):
            h0 = h_sc[...]
            c0 = c_sc[...]

            def body(t, carry):
                h, c = carry
                row = pl.multiple_of(t * b_pad, b_pad)
                xw_t = xw_sc[pl.ds(row, b_pad), :]                  # (b_pad, G)
                h_mxu = h.astype(mxu_dtype) if cast_lhs else h
                gates = xw_t + jnp.dot(h_mxu, w_hh,
                                       preferred_element_type=jnp.float32)
                i_g = jax.nn.sigmoid(gates[:, 0 * gate_stride:0 * gate_stride + hw])
                f_g = jax.nn.sigmoid(gates[:, 1 * gate_stride:1 * gate_stride + hw])
                g_g = jnp.tanh(gates[:, 2 * gate_stride:2 * gate_stride + hw])
                o_g = jax.nn.sigmoid(gates[:, 3 * gate_stride:3 * gate_stride + hw])
                c_new = f_g * c + i_g * g_g
                h_new = o_g * jnp.tanh(c_new)
                out_ref[pl.ds(row, b_pad), :] = h_new.astype(out_ref.dtype)
                return h_new, c_new

            h_fin, c_fin = lax.fori_loop(0, n_steps, body, (h0, c0),
                                         unroll=unroll_n)
            h_sc[...] = h_fin
            c_sc[...] = c_fin

        if last_steps == t_chunk:
            # All chunks are full: a single static-bound loop.
            run_steps(t_chunk, unroll)
        else:
            # Run only the real steps of the final partial chunk.
            @pl.when(s < n_chunks - 1)
            def _():
                run_steps(t_chunk, unroll)

            @pl.when(s == n_chunks - 1)
            def _():
                run_steps(last_steps, True if last_steps <= 16 else unroll)

    return kernel


def my_rnn_forward(inputs, w_ih, w_hh, b_ih, b_hh, *,
                   mxu_dtype=jnp.bfloat16,
                   vmem_budget_bytes=36 * 1024 * 1024):
    """Pallas-backed forward of MyRNN (LSTM, num_layers=1, unidirectional).

    inputs: (B, T, D) float32 (batch_first, like the PyTorch module)
    w_ih  : (4H, D), w_hh: (4H, H), b_ih: (4H,), b_hh: (4H,)  (PyTorch layout)
    returns (rnn_outputs (B, T, H), ht (1, B, H))
    """
    B, T, D = inputs.shape
    H = w_hh.shape[1]
    dtype = inputs.dtype

    b_pad = _round_up(B, 8)                  # sublane multiple (f32)
    # Small-H specialization: pack gates contiguously when H < 128; keep the
    # 128-lane-aligned per-gate layout (lane-dense output/gates) for H >= 128.
    hw = _round_up(H, 128) if H >= 128 else _round_up(H, 8)
    gate_stride = hw
    G = _round_up(4 * hw, 128)

    mxu_bytes = jnp.dtype(mxu_dtype).itemsize

    # --- t_chunk from a VMEM budget that fits all TPU generations.
    fixed_bytes = (D * G + hw * G) * mxu_bytes + G * 4 + 2 * b_pad * hw * 4
    per_step_bytes = b_pad * (2 * D * mxu_bytes + 2 * hw * 4 + G * 4)
    t_chunk = int(max(1, min(T, 512,
                             (vmem_budget_bytes - fixed_bytes) // per_step_bytes)))
    n_chunks = -(-T // t_chunk)
    t_total = n_chunks * t_chunk
    last_steps = T - (n_chunks - 1) * t_chunk

    est_bytes = fixed_bytes + per_step_bytes * t_chunk
    vmem_limit_bytes = int(min(max(2 * est_bytes, 32 << 20), 48 << 20))

    # --- weight packing: PyTorch row blocks [i; f; g; o] -> transposed, each
    #     gate's output dim padded to hw, total lane dim padded to G.
    def pack_w(w, in_dim, in_pad):
        wb = w.reshape(4, H, in_dim).astype(jnp.float32)            # (gate, out, in)
        wb = jnp.pad(wb, ((0, 0), (0, hw - H), (0, in_pad - in_dim)))
        wt = jnp.transpose(wb, (2, 0, 1)).reshape(in_pad, 4 * hw)   # (in, gate*out)
        wt = jnp.pad(wt, ((0, 0), (0, G - 4 * hw)))
        return wt.astype(mxu_dtype)

    w_ih_t = pack_w(w_ih, D, D)                                     # (D, G)
    w_hh_t = pack_w(w_hh, H, hw)                                    # (hw, G)
    b = jnp.pad((b_ih + b_hh).astype(jnp.float32).reshape(4, H),
                ((0, 0), (0, hw - H))).reshape(1, 4 * hw)
    b = jnp.pad(b, ((0, 0), (0, G - 4 * hw)))                       # (1, G) f32

    # --- time-major, batch/time padded, flattened to a 2-D (sublane, lane) slab,
    #     cast to bf16 for the MXU (single fused XLA copy under jit).
    x_tm = jnp.transpose(inputs, (1, 0, 2)).astype(jnp.float32)     # (T, B, D)
    x_tm = jnp.pad(x_tm, ((0, t_total - T), (0, b_pad - B), (0, 0)))
    x_flat = x_tm.reshape(t_total * b_pad, D).astype(mxu_dtype)

    # Unroll tied to vreg pressure: deep unroll of the serially-dependent loop
    # only multiplies live gate values when the hidden width is large.
    if t_chunk <= 16:
        unroll = True
    elif hw >= 512:
        unroll = 2
    else:
        unroll = 8

    kernel = _make_lstm_kernel(t_chunk=t_chunk, last_steps=last_steps,
                               n_chunks=n_chunks, b_pad=b_pad, hw=hw,
                               gate_stride=gate_stride, unroll=unroll,
                               mxu_dtype=mxu_dtype)

    out_flat = pl.pallas_call(
        kernel,
        out_shape=jax.ShapeDtypeStruct((t_total * b_pad, hw), jnp.float32),
        grid_spec=pltpu.PrefetchScalarGridSpec(
            num_scalar_prefetch=0,
            grid=(n_chunks,),
            in_specs=[
                pl.BlockSpec((t_chunk * b_pad, D), lambda s: (s, 0)),   # x chunk
                pl.BlockSpec(memory_space=pltpu.MemorySpace.VMEM),      # W_ih^T (resident, 1 copy)
                pl.BlockSpec(memory_space=pltpu.MemorySpace.VMEM),      # W_hh^T (resident, 1 copy)
                pl.BlockSpec(memory_space=pltpu.MemorySpace.VMEM),      # bias   (resident, 1 copy)
            ],
            out_specs=pl.BlockSpec((t_chunk * b_pad, hw), lambda s: (s, 0)),
            scratch_shapes=[
                pltpu.VMEM((b_pad, hw), jnp.float32),                   # h carry
                pltpu.VMEM((b_pad, hw), jnp.float32),                   # c carry
                pltpu.VMEM((t_chunk * b_pad, G), jnp.float32),          # chunk xW + b
            ],
        ),
        compiler_params=pltpu.CompilerParams(
            dimension_semantics=("arbitrary",),      # time chunks are sequential
            vmem_limit_bytes=vmem_limit_bytes,
        ),
    )(x_flat, w_ih_t, w_hh_t, b)

    out = out_flat.reshape(t_total, b_pad, hw)[:T, :B, :H]
    rnn_outputs = jnp.transpose(out, (1, 0, 2)).astype(dtype)       # (B, T, H)
    ht = rnn_outputs[:, -1, :][None]                                # (1, B, H)
    return rnn_outputs, ht


def _lstm_reference(inputs, w_ih, w_hh, b_ih, b_hh):
    """Pure-JAX reference (lax.scan) matching PyTorch nn.LSTM semantics."""
    B, T, D = inputs.shape
    H = w_hh.shape[1]
    b = b_ih + b_hh

    def step(carry, x_t):
        h, c = carry
        gates = x_t @ w_ih.T + h @ w_hh.T + b
        i = jax.nn.sigmoid(gates[:, 0 * H:1 * H])
        f = jax.nn.sigmoid(gates[:, 1 * H:2 * H])
        g = jnp.tanh(gates[:, 2 * H:3 * H])
        o = jax.nn.sigmoid(gates[:, 3 * H:4 * H])
        c_new = f * c + i * g
        h_new = o * jnp.tanh(c_new)
        return (h_new, c_new), h_new

    h0 = jnp.zeros((B, H), jnp.float32)
    c0 = jnp.zeros((B, H), jnp.float32)
    (h_T, _), hs = lax.scan(step, (h0, c0), jnp.transpose(inputs, (1, 0, 2)))
    return jnp.transpose(hs, (1, 0, 2)), h_T[None]


if __name__ == "__main__":
    # Module config: MyRNN(input_size=32, hidden_dim=32) -> single-layer uni LSTM.
    B, T, D, H = 2, 8, 32, 32

    key = jax.random.PRNGKey(0)
    k_x, k_wih, k_whh, k_bih, k_bhh = jax.random.split(key, 5)
    bound = 1.0 / jnp.sqrt(H)

    x = jax.random.normal(k_x, (B, T, D), dtype=jnp.float32)
    w_ih = jax.random.uniform(k_wih, (4 * H, D), jnp.float32, -bound, bound)
    w_hh = jax.random.uniform(k_whh, (4 * H, H), jnp.float32, -bound, bound)
    b_ih = jax.random.uniform(k_bih, (4 * H,), jnp.float32, -bound, bound)
    b_hh = jax.random.uniform(k_bhh, (4 * H,), jnp.float32, -bound, bound)

    fwd = jax.jit(my_rnn_forward)
    rnn_outputs, ht = fwd(x, w_ih, w_hh, b_ih, b_hh)
    jax.block_until_ready((rnn_outputs, ht))

    # Sanity check against the pure-JAX f32 reference.  MXU operands are bf16
    # (f32 accumulation + f32 gate math), so tolerance is set accordingly.
    ref_out, ref_ht = _lstm_reference(x, w_ih, w_hh, b_ih, b_hh)
    assert rnn_outputs.shape == (B, T, H)
    assert ht.shape == (1, B, H)
    assert jnp.allclose(rnn_outputs, ref_out, atol=2e-2, rtol=2e-2)
    assert jnp.allclose(ht, ref_ht, atol=2e-2, rtol=2e-2)

    print("KERNEL_OK")
</pallas_src>

<mosaic_0001>
module attributes {stable_mosaic.version = 11 : i64} {
  func.func @kernel(%arg0: i32, %arg1: memref<64x32xbf16, #tpu.memory_space<vmem>>, %arg2: memref<32x128xbf16, #tpu.memory_space<vmem>>, %arg3: memref<32x128xbf16, #tpu.memory_space<vmem>>, %arg4: memref<1x128xf32, #tpu.memory_space<vmem>>, %arg5: memref<64x32xf32, #tpu.memory_space<vmem>>, %arg6: memref<8x32xf32, #tpu.memory_space<vmem>>, %arg7: memref<8x32xf32, #tpu.memory_space<vmem>>, %arg8: memref<64x128xf32, #tpu.memory_space<vmem>>) attributes {dimension_semantics = [#tpu.dimension_semantics<arbitrary>], iteration_bounds = array<i64: 1>, scalar_prefetch = 0 : i64, scratch_operands = 3 : i64, tpu.core_type = #tpu.core_type<tc>, window_params = [{transform_indices = @transform_0, window_bounds = array<i64: 64, 32>}, {pipeline_mode = #tpu.pipeline_mode<synchronous>, transform_indices = @transform_1, window_bounds = array<i64: 32, 128>}, {pipeline_mode = #tpu.pipeline_mode<synchronous>, transform_indices = @transform_2, window_bounds = array<i64: 32, 128>}, {pipeline_mode = #tpu.pipeline_mode<synchronous>, transform_indices = @transform_3, window_bounds = array<i64: 1, 128>}, {transform_indices = @transform_4, window_bounds = array<i64: 64, 32>}]} {
    %c0_i32 = arith.constant 0 : i32
    %0 = arith.cmpi eq, %arg0, %c0_i32 : i32
    %1 = arith.extui %0 : i1 to i32
    %c0_i32_0 = arith.constant 0 : i32
    %2 = arith.cmpi ne, %1, %c0_i32_0 : i32
    scf.if %2 {
      %cst_75 = arith.constant 0.000000e+00 : f32
      %287 = vector.broadcast %cst_75 : f32 to vector<8x32xf32>
      %c0_76 = arith.constant 0 : index
      %c0_77 = arith.constant 0 : index
      %288 = vector.load %arg6[%c0_76, %c0_77] : memref<8x32xf32, #tpu.memory_space<vmem>>, vector<8x32xf32>
      tpu.vector_store %arg6[%c0_76, %c0_77], %287 {strides = array<i32>} : memref<8x32xf32, #tpu.memory_space<vmem>>, vector<8x32xf32>,
      %cst_78 = arith.constant 0.000000e+00 : f32
      %289 = vector.broadcast %cst_78 : f32 to vector<8x32xf32>
      %c0_79 = arith.constant 0 : index
      %c0_80 = arith.constant 0 : index
      %290 = vector.load %arg7[%c0_79, %c0_80] : memref<8x32xf32, #tpu.memory_space<vmem>>, vector<8x32xf32>
      tpu.vector_store %arg7[%c0_79, %c0_80], %289 {strides = array<i32>} : memref<8x32xf32, #tpu.memory_space<vmem>>, vector<8x32xf32>,
    } else {
    }
    %c0 = arith.constant 0 : index
    %c0_1 = arith.constant 0 : index
    %3 = vector.load %arg1[%c0, %c0_1] : memref<64x32xbf16, #tpu.memory_space<vmem>>, vector<64x32xbf16>
    %c0_2 = arith.constant 0 : index
    %c0_3 = arith.constant 0 : index
    %4 = vector.load %arg2[%c0_2, %c0_3] : memref<32x128xbf16, #tpu.memory_space<vmem>>, vector<32x128xbf16>
    %cst = arith.constant dense<0.000000e+00> : vector<64x128xf32>
    %5 = tpu.matmul %3, %4, %cst {dimension_numbers = #tpu.dot_dimension_numbers<[1], [0], [0], [1], [0, 0, 1, 1], [], []>} : vector<64x32xbf16>, vector<32x128xbf16>, vector<64x128xf32> -> vector<64x128xf32>
    %c0_4 = arith.constant 0 : index
    %c0_5 = arith.constant 0 : index
    %6 = vector.load %arg4[%c0_4, %c0_5] : memref<1x128xf32, #tpu.memory_space<vmem>>, vector<1x128xf32>
    %7 = vector.broadcast %6 : vector<1x128xf32> to vector<64x128xf32>
    %8 = arith.addf %5, %7 : vector<64x128xf32>
    %c0_6 = arith.constant 0 : index
    %c0_7 = arith.constant 0 : index
    %9 = vector.load %arg8[%c0_6, %c0_7] : memref<64x128xf32, #tpu.memory_space<vmem>>, vector<64x128xf32>
    tpu.vector_store %arg8[%c0_6, %c0_7], %8 {strides = array<i32>} : memref<64x128xf32, #tpu.memory_space<vmem>>, vector<64x128xf32>,
    %c0_8 = arith.constant 0 : index
    %c0_9 = arith.constant 0 : index
    %10 = vector.load %arg3[%c0_8, %c0_9] : memref<32x128xbf16, #tpu.memory_space<vmem>>, vector<32x128xbf16>
    %c0_10 = arith.constant 0 : index
    %c0_11 = arith.constant 0 : index
    %11 = vector.load %arg6[%c0_10, %c0_11] : memref<8x32xf32, #tpu.memory_space<vmem>>, vector<8x32xf32>
    %c0_12 = arith.constant 0 : index
    %c0_13 = arith.constant 0 : index
    %12 = vector.load %arg7[%c0_12, %c0_13] : memref<8x32xf32, #tpu.memory_space<vmem>>, vector<8x32xf32>
    %c0_i32_14 = arith.constant 0 : i32
    %c8_i32 = arith.constant 8 : i32
    %13 = arith.muli %c0_i32_14, %c8_i32 : i32
    %14 = tpu.assume_multiple %13, 8 : i32
    %15 = arith.index_cast %14 : i32 to index
    %c0_15 = arith.constant 0 : index
    %16 = vector.load %arg8[%15, %c0_15] : memref<64x128xf32, #tpu.memory_space<vmem>>, vector<8x128xf32>
    %17 = arith.truncf %11 : vector<8x32xf32> to vector<8x32xbf16>
    %cst_16 = arith.constant dense<0.000000e+00> : vector<8x128xf32>
    %18 = tpu.matmul %17, %10, %cst_16 {dimension_numbers = #tpu.dot_dimension_numbers<[1], [0], [0], [1], [0, 0, 1, 1], [], []>} : vector<8x32xbf16>, vector<32x128xbf16>, vector<8x128xf32> -> vector<8x128xf32>
    %19 = arith.addf %16, %18 : vector<8x128xf32>
    %20 = vector.extract_strided_slice %19 {offsets = [0, 0], sizes = [8, 32], strides = [1, 1]} : vector<8x128xf32> to vector<8x32xf32>
    %21 = arith.negf %20 : vector<8x32xf32>
    %22 = math.exp %21 : vector<8x32xf32>
    %cst_17 = arith.constant 1.000000e+00 : f32
    %23 = vector.broadcast %cst_17 : f32 to vector<8x32xf32>
    %24 = arith.addf %23, %22 : vector<8x32xf32>
    %25 = arith.divf %23, %24 : vector<8x32xf32>
    %26 = vector.extract_strided_slice %19 {offsets = [0, 32], sizes = [8, 32], strides = [1, 1]} : vector<8x128xf32> to vector<8x32xf32>
    %27 = arith.negf %26 : vector<8x32xf32>
    %28 = math.exp %27 : vector<8x32xf32>
    %cst_18 = arith.constant 1.000000e+00 : f32
    %29 = vector.broadcast %cst_18 : f32 to vector<8x32xf32>
    %30 = arith.addf %29, %28 : vector<8x32xf32>
    %31 = arith.divf %29, %30 : vector<8x32xf32>
    %32 = vector.extract_strided_slice %19 {offsets = [0, 64], sizes = [8, 32], strides = [1, 1]} : vector<8x128xf32> to vector<8x32xf32>
    %33 = math.tanh %32 : vector<8x32xf32>
    %34 = vector.extract_strided_slice %19 {offsets = [0, 96], sizes = [8, 32], strides = [1, 1]} : vector<8x128xf32> to vector<8x32xf32>
    %35 = arith.negf %34 : vector<8x32xf32>
    %36 = math.exp %35 : vector<8x32xf32>
    %cst_19 = arith.constant 1.000000e+00 : f32
    %37 = vector.broadcast %cst_19 : f32 to vector<8x32xf32>
    %38 = arith.addf %37, %36 : vector<8x32xf32>
    %39 = arith.divf %37, %38 : vector<8x32xf32>
    %40 = arith.mulf %31, %12 : vector<8x32xf32>
    %41 = arith.mulf %25, %33 : vector<8x32xf32>
    %42 = arith.addf %40, %41 : vector<8x32xf32>
    %43 = math.tanh %42 : vector<8x32xf32>
    %44 = arith.mulf %39, %43 : vector<8x32xf32>
    %45 = arith.index_cast %14 : i32 to index
    %c0_20 = arith.constant 0 : index
    %46 = vector.load %arg5[%45, %c0_20] : memref<64x32xf32, #tpu.memory_space<vmem>>, vector<8x32xf32>
    tpu.vector_store %arg5[%45, %c0_20], %44 {strides = array<i32>} : memref<64x32xf32, #tpu.memory_space<vmem>>, vector<8x32xf32>,
    %c1_i32 = arith.constant 1 : i32
    %c8_i32_21 = arith.constant 8 : i32
    %47 = arith.muli %c1_i32, %c8_i32_21 : i32
    %48 = tpu.assume_multiple %47, 8 : i32
    %49 = arith.index_cast %48 : i32 to index
    %c0_22 = arith.constant 0 : index
    %50 = vector.load %arg8[%49, %c0_22] : memref<64x128xf32, #tpu.memory_space<vmem>>, vector<8x128xf32>
    %51 = arith.truncf %44 : vector<8x32xf32> to vector<8x32xbf16>
    %cst_23 = arith.constant dense<0.000000e+00> : vector<8x128xf32>
    %52 = tpu.matmul %51, %10, %cst_23 {dimension_numbers = #tpu.dot_dimension_numbers<[1], [0], [0], [1], [0, 0, 1, 1], [], []>} : vector<8x32xbf16>, vector<32x128xbf16>, vector<8x128xf32> -> vector<8x128xf32>
    %53 = arith.addf %50, %52 : vector<8x128xf32>
    %54 = vector.extract_strided_slice %53 {offsets = [0, 0], sizes = [8, 32], strides = [1, 1]} : vector<8x128xf32> to vector<8x32xf32>
    %55 = arith.negf %54 : vector<8x32xf32>
    %56 = math.exp %55 : vector<8x32xf32>
    %cst_24 = arith.constant 1.000000e+00 : f32
    %57 = vector.broadcast %cst_24 : f32 to vector<8x32xf32>
    %58 = arith.addf %57, %56 : vector<8x32xf32>
    %59 = arith.divf %57, %58 : vector<8x32xf32>
    %60 = vector.extract_strided_slice %53 {offsets = [0, 32], sizes = [8, 32], strides = [1, 1]} : vector<8x128xf32> to vector<8x32xf32>
    %61 = arith.negf %60 : vector<8x32xf32>
    %62 = math.exp %61 : vector<8x32xf32>
    %cst_25 = arith.constant 1.000000e+00 : f32
    %63 = vector.broadcast %cst_25 : f32 to vector<8x32xf32>
    %64 = arith.addf %63, %62 : vector<8x32xf32>
    %65 = arith.divf %63, %64 : vector<8x32xf32>
    %66 = vector.extract_strided_slice %53 {offsets = [0, 64], sizes = [8, 32], strides = [1, 1]} : vector<8x128xf32> to vector<8x32xf32>
    %67 = math.tanh %66 : vector<8x32xf32>
    %68 = vector.extract_strided_slice %53 {offsets = [0, 96], sizes = [8, 32], strides = [1, 1]} : vector<8x128xf32> to vector<8x32xf32>
    %69 = arith.negf %68 : vector<8x32xf32>
    %70 = math.exp %69 : vector<8x32xf32>
    %cst_26 = arith.constant 1.000000e+00 : f32
    %71 = vector.broadcast %cst_26 : f32 to vector<8x32xf32>
    %72 = arith.addf %71, %70 : vector<8x32xf32>
    %73 = arith.divf %71, %72 : vector<8x32xf32>
    %74 = arith.mulf %65, %42 : vector<8x32xf32>
    %75 = arith.mulf %59, %67 : vector<8x32xf32>
    %76 = arith.addf %74, %75 : vector<8x32xf32>
    %77 = math.tanh %76 : vector<8x32xf32>
    %78 = arith.mulf %73, %77 : vector<8x32xf32>
    %79 = arith.index_cast %48 : i32 to index
    %c0_27 = arith.constant 0 : index
    %80 = vector.load %arg5[%79, %c0_27] : memref<64x32xf32, #tpu.memory_space<vmem>>, vector<8x32xf32>
    tpu.vector_store %arg5[%79, %c0_27], %78 {strides = array<i32>} : memref<64x32xf32, #tpu.memory_space<vmem>>, vector<8x32xf32>,
    %c2_i32 = arith.constant 2 : i32
    %c8_i32_28 = arith.constant 8 : i32
    %81 = arith.muli %c2_i32, %c8_i32_28 : i32
    %82 = tpu.assume_multiple %81, 8 : i32
    %83 = arith.index_cast %82 : i32 to index
    %c0_29 = arith.constant 0 : index
    %84 = vector.load %arg8[%83, %c0_29] : memref<64x128xf32, #tpu.memory_space<vmem>>, vector<8x128xf32>
    %85 = arith.truncf %78 : vector<8x32xf32> to vector<8x32xbf16>
    %cst_30 = arith.constant dense<0.000000e+00> : vector<8x128xf32>
    %86 = tpu.matmul %85, %10, %cst_30 {dimension_numbers = #tpu.dot_dimension_numbers<[1], [0], [0], [1], [0, 0, 1, 1], [], []>} : vector<8x32xbf16>, vector<32x128xbf16>, vector<8x128xf32> -> vector<8x128xf32>
    %87 = arith.addf %84, %86 : vector<8x128xf32>
    %88 = vector.extract_strided_slice %87 {offsets = [0, 0], sizes = [8, 32], strides = [1, 1]} : vector<8x128xf32> to vector<8x32xf32>
    %89 = arith.negf %88 : vector<8x32xf32>
    %90 = math.exp %89 : vector<8x32xf32>
    %cst_31 = arith.constant 1.000000e+00 : f32
    %91 = vector.broadcast %cst_31 : f32 to vector<8x32xf32>
    %92 = arith.addf %91, %90 : vector<8x32xf32>
    %93 = arith.divf %91, %92 : vector<8x32xf32>
    %94 = vector.extract_strided_slice %87 {offsets = [0, 32], sizes = [8, 32], strides = [1, 1]} : vector<8x128xf32> to vector<8x32xf32>
    %95 = arith.negf %94 : vector<8x32xf32>
    %96 = math.exp %95 : vector<8x32xf32>
    %cst_32 = arith.constant 1.000000e+00 : f32
    %97 = vector.broadcast %cst_32 : f32 to vector<8x32xf32>
    %98 = arith.addf %97, %96 : vector<8x32xf32>
    %99 = arith.divf %97, %98 : vector<8x32xf32>
    %100 = vector.extract_strided_slice %87 {offsets = [0, 64], sizes = [8, 32], strides = [1, 1]} : vector<8x128xf32> to vector<8x32xf32>
    %101 = math.tanh %100 : vector<8x32xf32>
    %102 = vector.extract_strided_slice %87 {offsets = [0, 96], sizes = [8, 32], strides = [1, 1]} : vector<8x128xf32> to vector<8x32xf32>
    %103 = arith.negf %102 : vector<8x32xf32>
    %104 = math.exp %103 : vector<8x32xf32>
    %cst_33 = arith.constant 1.000000e+00 : f32
    %105 = vector.broadcast %cst_33 : f32 to vector<8x32xf32>
    %106 = arith.addf %105, %104 : vector<8x32xf32>
    %107 = arith.divf %105, %106 : vector<8x32xf32>
    %108 = arith.mulf %99, %76 : vector<8x32xf32>
    %109 = arith.mulf %93, %101 : vector<8x32xf32>
    %110 = arith.addf %108, %109 : vector<8x32xf32>
    %111 = math.tanh %110 : vector<8x32xf32>
    %112 = arith.mulf %107, %111 : vector<8x32xf32>
    %113 = arith.index_cast %82 : i32 to index
    %c0_34 = arith.constant 0 : index
    %114 = vector.load %arg5[%113, %c0_34] : memref<64x32xf32, #tpu.memory_space<vmem>>, vector<8x32xf32>
    tpu.vector_store %arg5[%113, %c0_34], %112 {strides = array<i32>} : memref<64x32xf32, #tpu.memory_space<vmem>>, vector<8x32xf32>,
    %c3_i32 = arith.constant 3 : i32
    %c8_i32_35 = arith.constant 8 : i32
    %115 = arith.muli %c3_i32, %c8_i32_35 : i32
    %116 = tpu.assume_multiple %115, 8 : i32
    %117 = arith.index_cast %116 : i32 to index
    %c0_36 = arith.constant 0 : index
    %118 = vector.load %arg8[%117, %c0_36] : memref<64x128xf32, #tpu.memory_space<vmem>>, vector<8x128xf32>
    %119 = arith.truncf %112 : vector<8x32xf32> to vector<8x32xbf16>
    %cst_37 = arith.constant dense<0.000000e+00> : vector<8x128xf32>
    %120 = tpu.matmul %119, %10, %cst_37 {dimension_numbers = #tpu.dot_dimension_numbers<[1], [0], [0], [1], [0, 0, 1, 1], [], []>} : vector<8x32xbf16>, vector<32x128xbf16>, vector<8x128xf32> -> vector<8x128xf32>
    %121 = arith.addf %118, %120 : vector<8x128xf32>
    %122 = vector.extract_strided_slice %121 {offsets = [0, 0], sizes = [8, 32], strides = [1, 1]} : vector<8x128xf32> to vector<8x32xf32>
    %123 = arith.negf %122 : vector<8x32xf32>
    %124 = math.exp %123 : vector<8x32xf32>
    %cst_38 = arith.constant 1.000000e+00 : f32
    %125 = vector.broadcast %cst_38 : f32 to vector<8x32xf32>
    %126 = arith.addf %125, %124 : vector<8x32xf32>
    %127 = arith.divf %125, %126 : vector<8x32xf32>
    %128 = vector.extract_strided_slice %121 {offsets = [0, 32], sizes = [8, 32], strides = [1, 1]} : vector<8x128xf32> to vector<8x32xf32>
    %129 = arith.negf %128 : vector<8x32xf32>
    %130 = math.exp %129 : vector<8x32xf32>
    %cst_39 = arith.constant 1.000000e+00 : f32
    %131 = vector.broadcast %cst_39 : f32 to vector<8x32xf32>
    %132 = arith.addf %131, %130 : vector<8x32xf32>
    %133 = arith.divf %131, %132 : vector<8x32xf32>
    %134 = vector.extract_strided_slice %121 {offsets = [0, 64], sizes = [8, 32], strides = [1, 1]} : vector<8x128xf32> to vector<8x32xf32>
    %135 = math.tanh %134 : vector<8x32xf32>
    %136 = vector.extract_strided_slice %121 {offsets = [0, 96], sizes = [8, 32], strides = [1, 1]} : vector<8x128xf32> to vector<8x32xf32>
    %137 = arith.negf %136 : vector<8x32xf32>
    %138 = math.exp %137 : vector<8x32xf32>
    %cst_40 = arith.constant 1.000000e+00 : f32
    %139 = vector.broadcast %cst_40 : f32 to vector<8x32xf32>
    %140 = arith.addf %139, %138 : vector<8x32xf32>
    %141 = arith.divf %139, %140 : vector<8x32xf32>
    %142 = arith.mulf %133, %110 : vector<8x32xf32>
    %143 = arith.mulf %127, %135 : vector<8x32xf32>
    %144 = arith.addf %142, %143 : vector<8x32xf32>
    %145 = math.tanh %144 : vector<8x32xf32>
    %146 = arith.mulf %141, %145 : vector<8x32xf32>
    %147 = arith.index_cast %116 : i32 to index
    %c0_41 = arith.constant 0 : index
    %148 = vector.load %arg5[%147, %c0_41] : memref<64x32xf32, #tpu.memory_space<vmem>>, vector<8x32xf32>
    tpu.vector_store %arg5[%147, %c0_41], %146 {strides = array<i32>} : memref<64x32xf32, #tpu.memory_space<vmem>>, vector<8x32xf32>,
    %c4_i32 = arith.constant 4 : i32
    %c8_i32_42 = arith.constant 8 : i32
    %149 = arith.muli %c4_i32, %c8_i32_42 : i32
    %150 = tpu.assume_multiple %149, 8 : i32
    %151 = arith.index_cast %150 : i32 to index
    %c0_43 = arith.constant 0 : index
    %152 = vector.load %arg8[%151, %c0_43] : memref<64x128xf32, #tpu.memory_space<vmem>>, vector<8x128xf32>
    %153 = arith.truncf %146 : vector<8x32xf32> to vector<8x32xbf16>
    %cst_44 = arith.constant dense<0.000000e+00> : vector<8x128xf32>
    %154 = tpu.matmul %153, %10, %cst_44 {dimension_numbers = #tpu.dot_dimension_numbers<[1], [0], [0], [1], [0, 0, 1, 1], [], []>} : vector<8x32xbf16>, vector<32x128xbf16>, vector<8x128xf32> -> vector<8x128xf32>
    %155 = arith.addf %152, %154 : vector<8x128xf32>
    %156 = vector.extract_strided_slice %155 {offsets = [0, 0], sizes = [8, 32], strides = [1, 1]} : vector<8x128xf32> to vector<8x32xf32>
    %157 = arith.negf %156 : vector<8x32xf32>
    %158 = math.exp %157 : vector<8x32xf32>
    %cst_45 = arith.constant 1.000000e+00 : f32
    %159 = vector.broadcast %cst_45 : f32 to vector<8x32xf32>
    %160 = arith.addf %159, %158 : vector<8x32xf32>
    %161 = arith.divf %159, %160 : vector<8x32xf32>
    %162 = vector.extract_strided_slice %155 {offsets = [0, 32], sizes = [8, 32], strides = [1, 1]} : vector<8x128xf32> to vector<8x32xf32>
    %163 = arith.negf %162 : vector<8x32xf32>
    %164 = math.exp %163 : vector<8x32xf32>
    %cst_46 = arith.constant 1.000000e+00 : f32
    %165 = vector.broadcast %cst_46 : f32 to vector<8x32xf32>
    %166 = arith.addf %165, %164 : vector<8x32xf32>
    %167 = arith.divf %165, %166 : vector<8x32xf32>
    %168 = vector.extract_strided_slice %155 {offsets = [0, 64], sizes = [8, 32], strides = [1, 1]} : vector<8x128xf32> to vector<8x32xf32>
    %169 = math.tanh %168 : vector<8x32xf32>
    %170 = vector.extract_strided_slice %155 {offsets = [0, 96], sizes = [8, 32], strides = [1, 1]} : vector<8x128xf32> to vector<8x32xf32>
    %171 = arith.negf %170 : vector<8x32xf32>
    %172 = math.exp %171 : vector<8x32xf32>
    %cst_47 = arith.constant 1.000000e+00 : f32
    %173 = vector.broadcast %cst_47 : f32 to vector<8x32xf32>
    %174 = arith.addf %173, %172 : vector<8x32xf32>
    %175 = arith.divf %173, %174 : vector<8x32xf32>
    %176 = arith.mulf %167, %144 : vector<8x32xf32>
    %177 = arith.mulf %161, %169 : vector<8x32xf32>
    %178 = arith.addf %176, %177 : vector<8x32xf32>
    %179 = math.tanh %178 : vector<8x32xf32>
    %180 = arith.mulf %175, %179 : vector<8x32xf32>
    %181 = arith.index_cast %150 : i32 to index
    %c0_48 = arith.constant 0 : index
    %182 = vector.load %arg5[%181, %c0_48] : memref<64x32xf32, #tpu.memory_space<vmem>>, vector<8x32xf32>
    tpu.vector_store %arg5[%181, %c0_48], %180 {strides = array<i32>} : memref<64x32xf32, #tpu.memory_space<vmem>>, vector<8x32xf32>,
    %c5_i32 = arith.constant 5 : i32
    %c8_i32_49 = arith.constant 8 : i32
    %183 = arith.muli %c5_i32, %c8_i32_49 : i32
    %184 = tpu.assume_multiple %183, 8 : i32
    %185 = arith.index_cast %184 : i32 to index
    %c0_50 = arith.constant 0 : index
    %186 = vector.load %arg8[%185, %c0_50] : memref<64x128xf32, #tpu.memory_space<vmem>>, vector<8x128xf32>
    %187 = arith.truncf %180 : vector<8x32xf32> to vector<8x32xbf16>
    %cst_51 = arith.constant dense<0.000000e+00> : vector<8x128xf32>
    %188 = tpu.matmul %187, %10, %cst_51 {dimension_numbers = #tpu.dot_dimension_numbers<[1], [0], [0], [1], [0, 0, 1, 1], [], []>} : vector<8x32xbf16>, vector<32x128xbf16>, vector<8x128xf32> -> vector<8x128xf32>
    %189 = arith.addf %186, %188 : vector<8x128xf32>
    %190 = vector.extract_strided_slice %189 {offsets = [0, 0], sizes = [8, 32], strides = [1, 1]} : vector<8x128xf32> to vector<8x32xf32>
    %191 = arith.negf %190 : vector<8x32xf32>
    %192 = math.exp %191 : vector<8x32xf32>
    %cst_52 = arith.constant 1.000000e+00 : f32
    %193 = vector.broadcast %cst_52 : f32 to vector<8x32xf32>
    %194 = arith.addf %193, %192 : vector<8x32xf32>
    %195 = arith.divf %193, %194 : vector<8x32xf32>
    %196 = vector.extract_strided_slice %189 {offsets = [0, 32], sizes = [8, 32], strides = [1, 1]} : vector<8x128xf32> to vector<8x32xf32>
    %197 = arith.negf %196 : vector<8x32xf32>
    %198 = math.exp %197 : vector<8x32xf32>
    %cst_53 = arith.constant 1.000000e+00 : f32
    %199 = vector.broadcast %cst_53 : f32 to vector<8x32xf32>
    %200 = arith.addf %199, %198 : vector<8x32xf32>
    %201 = arith.divf %199, %200 : vector<8x32xf32>
    %202 = vector.extract_strided_slice %189 {offsets = [0, 64], sizes = [8, 32], strides = [1, 1]} : vector<8x128xf32> to vector<8x32xf32>
    %203 = math.tanh %202 : vector<8x32xf32>
    %204 = vector.extract_strided_slice %189 {offsets = [0, 96], sizes = [8, 32], strides = [1, 1]} : vector<8x128xf32> to vector<8x32xf32>
    %205 = arith.negf %204 : vector<8x32xf32>
    %206 = math.exp %205 : vector<8x32xf32>
    %cst_54 = arith.constant 1.000000e+00 : f32
    %207 = vector.broadcast %cst_54 : f32 to vector<8x32xf32>
    %208 = arith.addf %207, %206 : vector<8x32xf32>
    %209 = arith.divf %207, %208 : vector<8x32xf32>
    %210 = arith.mulf %201, %178 : vector<8x32xf32>
    %211 = arith.mulf %195, %203 : vector<8x32xf32>
    %212 = arith.addf %210, %211 : vector<8x32xf32>
    %213 = math.tanh %212 : vector<8x32xf32>
    %214 = arith.mulf %209, %213 : vector<8x32xf32>
    %215 = arith.index_cast %184 : i32 to index
    %c0_55 = arith.constant 0 : index
    %216 = vector.load %arg5[%215, %c0_55] : memref<64x32xf32, #tpu.memory_space<vmem>>, vector<8x32xf32>
    tpu.vector_store %arg5[%215, %c0_55], %214 {strides = array<i32>} : memref<64x32xf32, #tpu.memory_space<vmem>>, vector<8x32xf32>,
    %c6_i32 = arith.constant 6 : i32
    %c8_i32_56 = arith.constant 8 : i32
    %217 = arith.muli %c6_i32, %c8_i32_56 : i32
    %218 = tpu.assume_multiple %217, 8 : i32
    %219 = arith.index_cast %218 : i32 to index
    %c0_57 = arith.constant 0 : index
    %220 = vector.load %arg8[%219, %c0_57] : memref<64x128xf32, #tpu.memory_space<vmem>>, vector<8x128xf32>
    %221 = arith.truncf %214 : vector<8x32xf32> to vector<8x32xbf16>
    %cst_58 = arith.constant dense<0.000000e+00> : vector<8x128xf32>
    %222 = tpu.matmul %221, %10, %cst_58 {dimension_numbers = #tpu.dot_dimension_numbers<[1], [0], [0], [1], [0, 0, 1, 1], [], []>} : vector<8x32xbf16>, vector<32x128xbf16>, vector<8x128xf32> -> vector<8x128xf32>
    %223 = arith.addf %220, %222 : vector<8x128xf32>
    %224 = vector.extract_strided_slice %223 {offsets = [0, 0], sizes = [8, 32], strides = [1, 1]} : vector<8x128xf32> to vector<8x32xf32>
    %225 = arith.negf %224 : vector<8x32xf32>
    %226 = math.exp %225 : vector<8x32xf32>
    %cst_59 = arith.constant 1.000000e+00 : f32
    %227 = vector.broadcast %cst_59 : f32 to vector<8x32xf32>
    %228 = arith.addf %227, %226 : vector<8x32xf32>
    %229 = arith.divf %227, %228 : vector<8x32xf32>
    %230 = vector.extract_strided_slice %223 {offsets = [0, 32], sizes = [8, 32], strides = [1, 1]} : vector<8x128xf32> to vector<8x32xf32>
    %231 = arith.negf %230 : vector<8x32xf32>
    %232 = math.exp %231 : vector<8x32xf32>
    %cst_60 = arith.constant 1.000000e+00 : f32
    %233 = vector.broadcast %cst_60 : f32 to vector<8x32xf32>
    %234 = arith.addf %233, %232 : vector<8x32xf32>
    %235 = arith.divf %233, %234 : vector<8x32xf32>
    %236 = vector.extract_strided_slice %223 {offsets = [0, 64], sizes = [8, 32], strides = [1, 1]} : vector<8x128xf32> to vector<8x32xf32>
    %237 = math.tanh %236 : vector<8x32xf32>
    %238 = vector.extract_strided_slice %223 {offsets = [0, 96], sizes = [8, 32], strides = [1, 1]} : vector<8x128xf32> to vector<8x32xf32>
    %239 = arith.negf %238 : vector<8x32xf32>
    %240 = math.exp %239 : vector<8x32xf32>
    %cst_61 = arith.constant 1.000000e+00 : f32
    %241 = vector.broadcast %cst_61 : f32 to vector<8x32xf32>
    %242 = arith.addf %241, %240 : vector<8x32xf32>
    %243 = arith.divf %241, %242 : vector<8x32xf32>
    %244 = arith.mulf %235, %212 : vector<8x32xf32>
    %245 = arith.mulf %229, %237 : vector<8x32xf32>
    %246 = arith.addf %244, %245 : vector<8x32xf32>
    %247 = math.tanh %246 : vector<8x32xf32>
    %248 = arith.mulf %243, %247 : vector<8x32xf32>
    %249 = arith.index_cast %218 : i32 to index
    %c0_62 = arith.constant 0 : index
    %250 = vector.load %arg5[%249, %c0_62] : memref<64x32xf32, #tpu.memory_space<vmem>>, vector<8x32xf32>
    tpu.vector_store %arg5[%249, %c0_62], %248 {strides = array<i32>} : memref<64x32xf32, #tpu.memory_space<vmem>>, vector<8x32xf32>,
    %c7_i32 = arith.constant 7 : i32
    %c8_i32_63 = arith.constant 8 : i32
    %251 = arith.muli %c7_i32, %c8_i32_63 : i32
    %252 = tpu.assume_multiple %251, 8 : i32
    %253 = arith.index_cast %252 : i32 to index
    %c0_64 = arith.constant 0 : index
    %254 = vector.load %arg8[%253, %c0_64] : memref<64x128xf32, #tpu.memory_space<vmem>>, vector<8x128xf32>
    %255 = arith.truncf %248 : vector<8x32xf32> to vector<8x32xbf16>
    %cst_65 = arith.constant dense<0.000000e+00> : vector<8x128xf32>
    %256 = tpu.matmul %255, %10, %cst_65 {dimension_numbers = #tpu.dot_dimension_numbers<[1], [0], [0], [1], [0, 0, 1, 1], [], []>} : vector<8x32xbf16>, vector<32x128xbf16>, vector<8x128xf32> -> vector<8x128xf32>
    %257 = arith.addf %254, %256 : vector<8x128xf32>
    %258 = vector.extract_strided_slice %257 {offsets = [0, 0], sizes = [8, 32], strides = [1, 1]} : vector<8x128xf32> to vector<8x32xf32>
    %259 = arith.negf %258 : vector<8x32xf32>
    %260 = math.exp %259 : vector<8x32xf32>
    %cst_66 = arith.constant 1.000000e+00 : f32
    %261 = vector.broadcast %cst_66 : f32 to vector<8x32xf32>
    %262 = arith.addf %261, %260 : vector<8x32xf32>
    %263 = arith.divf %261, %262 : vector<8x32xf32>
    %264 = vector.extract_strided_slice %257 {offsets = [0, 32], sizes = [8, 32], strides = [1, 1]} : vector<8x128xf32> to vector<8x32xf32>
    %265 = arith.negf %264 : vector<8x32xf32>
    %266 = math.exp %265 : vector<8x32xf32>
    %cst_67 = arith.constant 1.000000e+00 : f32
    %267 = vector.broadcast %cst_67 : f32 to vector<8x32xf32>
    %268 = arith.addf %267, %266 : vector<8x32xf32>
    %269 = arith.divf %267, %268 : vector<8x32xf32>
    %270 = vector.extract_strided_slice %257 {offsets = [0, 64], sizes = [8, 32], strides = [1, 1]} : vector<8x128xf32> to vector<8x32xf32>
    %271 = math.tanh %270 : vector<8x32xf32>
    %272 = vector.extract_strided_slice %257 {offsets = [0, 96], sizes = [8, 32], strides = [1, 1]} : vector<8x128xf32> to vector<8x32xf32>
    %273 = arith.negf %272 : vector<8x32xf32>
    %274 = math.exp %273 : vector<8x32xf32>
    %cst_68 = arith.constant 1.000000e+00 : f32
    %275 = vector.broadcast %cst_68 : f32 to vector<8x32xf32>
    %276 = arith.addf %275, %274 : vector<8x32xf32>
    %277 = arith.divf %275, %276 : vector<8x32xf32>
    %278 = arith.mulf %269, %246 : vector<8x32xf32>
    %279 = arith.mulf %263, %271 : vector<8x32xf32>
    %280 = arith.addf %278, %279 : vector<8x32xf32>
    %281 = math.tanh %280 : vector<8x32xf32>
    %282 = arith.mulf %277, %281 : vector<8x32xf32>
    %283 = arith.index_cast %252 : i32 to index
    %c0_69 = arith.constant 0 : index
    %284 = vector.load %arg5[%283, %c0_69] : memref<64x32xf32, #tpu.memory_space<vmem>>, vector<8x32xf32>
    tpu.vector_store %arg5[%283, %c0_69], %282 {strides = array<i32>} : memref<64x32xf32, #tpu.memory_space<vmem>>, vector<8x32xf32>,
    %c8_i32_70 = arith.constant 8 : i32
    %c0_71 = arith.constant 0 : index
    %c0_72 = arith.constant 0 : index
    %285 = vector.load %arg6[%c0_71, %c0_72] : memref<8x32xf32, #tpu.memory_space<vmem>>, vector<8x32xf32>
    tpu.vector_store %arg6[%c0_71, %c0_72], %282 {strides = array<i32>} : memref<8x32xf32, #tpu.memory_space<vmem>>, vector<8x32xf32>,
    %c0_73 = arith.constant 0 : index
    %c0_74 = arith.constant 0 : index
    %286 = vector.load %arg7[%c0_73, %c0_74] : memref<8x32xf32, #tpu.memory_space<vmem>>, vector<8x32xf32>
    tpu.vector_store %arg7[%c0_73, %c0_74], %280 {strides = array<i32>} : memref<8x32xf32, #tpu.memory_space<vmem>>, vector<8x32xf32>,
    return
  }
  func.func @transform_0(%arg0: i32) -> (i32, i32) {
    %c0_i32 = arith.constant 0 : i32
    %c0_i32_0 = arith.constant 0 : i32
    return %arg0, %c0_i32 : i32, i32
  }
  func.func @transform_1(%arg0: i32) -> (i32, i32) {
    %c0_i32 = arith.constant 0 : i32
    %c0_i32_0 = arith.constant 0 : i32
    %c0_i32_1 = arith.constant 0 : i32
    return %c0_i32, %c0_i32_0 : i32, i32
  }
  func.func @transform_2(%arg0: i32) -> (i32, i32) {
    %c0_i32 = arith.constant 0 : i32
    %c0_i32_0 = arith.constant 0 : i32
    %c0_i32_1 = arith.constant 0 : i32
    return %c0_i32, %c0_i32_0 : i32, i32
  }
  func.func @transform_3(%arg0: i32) -> (i32, i32) {
    %c0_i32 = arith.constant 0 : i32
    %c0_i32_0 = arith.constant 0 : i32
    %c0_i32_1 = arith.constant 0 : i32
    return %c0_i32, %c0_i32_0 : i32, i32
  }
  func.func @transform_4(%arg0: i32) -> (i32, i32) {
    %c0_i32 = arith.constant 0 : i32
    %c0_i32_0 = arith.constant 0 : i32
    return %arg0, %c0_i32 : i32, i32
  }
}

</mosaic_0001>

<llo_original>
// kernel: my_rnn_forward.1
$region0: #{my_rnn_forward.1}
  #allocation0 [shape = 'u32[]', space=smem, size = 0x4, offset = 0x4, fixed_abs, tag = 'smem constant byte address 0x4 - core index']
  #allocation1 [shape = 'u32[72,128]{1,0:T(1,128)}', space=vmem, size = 0x9000, scoped, tag = 'internal scratch']
  #allocation2 [shape = 'f32[8,32]{1,0:T(8,128)}', space=vmem, size = 0x1000, scoped, tag = 'scratch operand']
  #allocation3 [shape = 'f32[8,32]{1,0:T(8,128)}', space=vmem, size = 0x1000, scoped, tag = 'scratch operand']
  #allocation4 [shape = 'f32[64,128]{1,0:T(8,128)}', space=vmem, size = 0x8000, scoped, tag = 'scratch operand']
  %s0 = inlined_call_operand.vmem [shape: bf16[64,32], index: 0, kind: input, shape index: {}]
  %s1 = inlined_call_operand.vmem [shape: bf16[32,128], index: 1, kind: input, shape index: {}]
  %s2 = inlined_call_operand.vmem [shape: bf16[32,128], index: 2, kind: input, shape index: {}]
  %s3 = inlined_call_operand.vmem [shape: f32[1,128], index: 3, kind: input, shape index: {}]
  %s4 = inlined_call_operand.vmem [shape: f32[64,32], index: 4, kind: output, shape index: {}]
  %s5 = sld [smem:[#allocation0]]
  $region30: #{my_rnn_forward.1} parent=0
    _
  %s7 = ssub.s32 1, %s5
  %s8 = scalar_select 0, %s7, %s5
  // Predicated region
  $region2: #{my_rnn_forward.1} parent=0 // pred_check
    _
  $region3: #{my_rnn_forward.1} parent=0 // pred_check_branch
    %10 = sbr.rel (0) target = $region5
  $region4: #{my_rnn_forward.1} parent=0 // pred_region
    _
  $region5: #{my_rnn_forward.1} parent=0 // pred_fallthru
    _
  // Predicated region
  $region6: #{my_rnn_forward.1} parent=0 // pred_check
    _
  $region7: #{my_rnn_forward.1} parent=0 // pred_check_branch
    %12 = sbr.rel (0) target = $region9
  $region8: #{my_rnn_forward.1} parent=0 // pred_region
    _
  $region9: #{my_rnn_forward.1} parent=0 // pred_fallthru
    _
  // Predicated region
  $region10: #{my_rnn_forward.1} parent=0 // pred_check
    _
  $region11: #{my_rnn_forward.1} parent=0 // pred_check_branch
    %14 = sbr.rel (0) target = $region13
  $region12: #{my_rnn_forward.1} parent=0 // pred_region
    _
  $region13: #{my_rnn_forward.1} parent=0 // pred_fallthru
    _
  // Predicated region
  $region14: #{my_rnn_forward.1} parent=0 // pred_check
    _
  $region15: #{my_rnn_forward.1} parent=0 // pred_check_branch
    %16 = sbr.rel (0) target = $region17
  $region16: #{my_rnn_forward.1} parent=0 // pred_region
    _
  $region17: #{my_rnn_forward.1} parent=0 // pred_fallthru
    _
  %p18 = scmp.eq.s32.totalorder 0, 0
  // Predicated region
  $region18: #{my_rnn_forward.1} parent=0 // pred_check
    %p19 = pneg %p18
  $region19: #{my_rnn_forward.1} parent=0 // pred_check_branch
    %21 = sbr.rel (%p19) target = $region21
  $region20: #{my_rnn_forward.1} parent=0 // pred_region
    %vm22 = vcmask 261120
    %23 = vst.msk [vmem:[#allocation2] sm:$0xff] %vm22, 0.0
    %24 = vst.msk [vmem:[#allocation3] sm:$0xff] %vm22, 0.0
  $region21: #{my_rnn_forward.1} parent=0 // pred_fallthru
    _
  %v25 = vld [vmem:[%s0] sm:$0xf]
  %v26 = vld [vmem:[%s0 + $0x4] sm:$0xf]
  %v27 = vld [vmem:[%s0 + $0x8] sm:$0xf]
  %v28 = vld [vmem:[%s0 + $0xc] sm:$0xf]
  %v29 = vld [vmem:[%s0 + $0x10] sm:$0xf]
  %v30 = vld [vmem:[%s0 + $0x14] sm:$0xf]
  %v31 = vld [vmem:[%s0 + $0x18] sm:$0xf]
  %v32 = vld [vmem:[%s0 + $0x1c] sm:$0xf]
  %v33 = vld [vmem:[%s1] sm:$0xf]
  %v34 = vld [vmem:[%s1 + $0x4] sm:$0xf]
  %v35 = vld [vmem:[%s1 + $0x8] sm:$0xf]
  %v36 = vld [vmem:[%s1 + $0xc] sm:$0xf]
  %v37 = vld [vmem:[%s3] sm:$0x1]
  %v39 = vperm.slane %v37, 0
  %v49 = vunpack.c.l.b16 %v25
  %v50 = vunpack.c.l.b16 %v26
  %v51 = vunpack.c.l.b16 %v27
  %v52 = vunpack.c.l.b16 %v28
  %v53 = vunpack.c.l.b16 %v29
  %v54 = vunpack.c.l.b16 %v30
  %v55 = vunpack.c.l.b16 %v31
  %v56 = vunpack.c.l.b16 %v32
  %v57 = vpack.c.b16 %v50, %v49
  %v58 = vpack.c.b16 %v52, %v51
  %v59 = vpack.c.b16 %v54, %v53
  %v60 = vpack.c.b16 %v56, %v55
  %v65 = vunpack.c.l.b16 %v33
  %v66 = vunpack.c.l.b16 %v34
  %v67 = vunpack.c.l.b16 %v35
  %v68 = vunpack.c.l.b16 %v36
  %v69 = vpack.c.b16 %v66, %v65
  %v70 = vpack.c.b16 %v68, %v67
  %vm73 = vcmask 261120
  %v75 = vsel %vm73, %v57, 0
  %v78 = vsel %vm73, %v58, 0
  %v81 = vsel %vm73, %v59, 0
  %v84 = vsel %vm73, %v60, 0
  %86 = vmatpush.bf16.msra.mxu0 0
  %87 = vmatpush.bf16.msra.mxu0 0
  %88 = vmatpush.bf16.msra.mxu0 0
  %89 = vmatpush.bf16.msra.mxu0 0
  %90 = vmatpush.bf16.msra.mxu0 0
  %91 = vmatpush.bf16.msra.mxu0 0
  %92 = vmatpush.bf16.msra.mxu0 %v70
  %93 = vmatpush.bf16.msra.mxu0 %v69
  %94 = vmatmul.bf16.gmra.mxu0 %v75
  %v95 = vpop.f32.mrf.mxu0
  %v96 = vadd.f32 %v39, %v95
  %v97 = vpop.f32.mrf.mxu0
  %v98 = vadd.f32 %v39, %v97
  %99 = vmatmul.bf16.gmra.mxu0 %v78
  %v100 = vpop.f32.mrf.mxu0
  %v101 = vadd.f32 %v39, %v100
  %v102 = vpop.f32.mrf.mxu0
  %v103 = vadd.f32 %v39, %v102
  %104 = vmatmul.bf16.gmra.mxu0 %v81
  %v105 = vpop.f32.mrf.mxu0
  %v106 = vadd.f32 %v39, %v105
  %v107 = vpop.f32.mrf.mxu0
  %v108 = vadd.f32 %v39, %v107
  %109 = vmatmul.bf16.gmra.mxu0 %v84
  %v110 = vpop.f32.mrf.mxu0
  %v111 = vadd.f32 %v39, %v110
  %v112 = vpop.f32.mrf.mxu0
  %v113 = vadd.f32 %v39, %v112
  %114 = vdwg.mxu0
  %115 = vst [vmem:[#allocation4] sm:$0xff] %v96
  %116 = vst [vmem:[#allocation4 + $0x8] sm:$0xff] %v98
  %117 = vst [vmem:[#allocation4 + $0x10] sm:$0xff] %v101
  %118 = vst [vmem:[#allocation4 + $0x18] sm:$0xff] %v103
  %119 = vst [vmem:[#allocation4 + $0x20] sm:$0xff] %v106
  %120 = vst [vmem:[#allocation4 + $0x28] sm:$0xff] %v108
  %121 = vst [vmem:[#allocation4 + $0x30] sm:$0xff] %v111
  %122 = vst [vmem:[#allocation4 + $0x38] sm:$0xff] %v113
  %v123 = vld [vmem:[%s2] sm:$0xf]
  %v124 = vld [vmem:[%s2 + $0x4] sm:$0xf]
  %v125 = vld [vmem:[%s2 + $0x8] sm:$0xf]
  %v126 = vld [vmem:[%s2 + $0xc] sm:$0xf]
  %v127 = vld [vmem:[#allocation2] sm:$0xff]
  %v128 = vld [vmem:[#allocation3] sm:$0xff]
  %v129 = vld [vmem:[#allocation4] sm:$0xff]
  %v130 = vpack.c.bf16 %v127, %v127
  %v135 = vunpack.c.l.b16 %v123
  %v136 = vunpack.c.l.b16 %v124
  %v137 = vunpack.c.l.b16 %v125
  %v138 = vunpack.c.l.b16 %v126
  %v139 = vpack.c.b16 %v136, %v135
  %v140 = vpack.c.b16 %v138, %v137
  %v144 = vsel %vm73, %v130, 0
  %146 = vmatpush.bf16.msra.mxu0 0
  %147 = vmatpush.bf16.msra.mxu0 0
  %148 = vmatpush.bf16.msra.mxu0 0
  %149 = vmatpush.bf16.msra.mxu0 0
  %150 = vmatpush.bf16.msra.mxu0 0
  %151 = vmatpush.bf16.msra.mxu0 0
  %152 = vmatpush.bf16.msra.mxu0 %v140
  %153 = vmatpush.bf16.msra.mxu0 %v139
  %154 = vmatmul.bf16.gmra.mxu0 %v144
  %v155 = vpop.f32.mrf.mxu0
  %v156 = vadd.f32 0.0, %v155
  %v157 = vpop.f32.mrf.mxu0
  %158 = vdwg.mxu0
  %v159 = vadd.f32 %v129, %v156
  %v160 = vxor.u32 %v159, 2147483648
  %v161 = vmul.f32 %v160, 1.442695
  %v162 = vpow.pop %v161
  %v163 = vadd.f32 %v162, 1.0
  %v164 = vrcp.pop %v163
  %v165 = vmul.f32 %v163, %v164
  %v166 = vsub.f32 1.0, %v165
  %v167 = vmul.f32 %v164, %v166
  %v168 = vadd.f32 %v164, %v167
  %vm169 = vweird.f32 %v163
  %vm170 = vweird.f32 %v164
  %vm171 = vmor %vm169, %vm170
  %v172 = vsel %vm171, %v164, %v168
  %v173 = vand.u32 2147483647, %v163
  %vm174 = vcmp.eq.f32.partialorder %v173, 8.507059e+37
  %v175 = vand.u32 %v163, 2147483648
  %v176 = vor.u32 1.1754944e-38, %v175
  %v177 = vsel %vm174, %v176, %v172
  %v178 = vmul.f32 1.0, %v177
  %v179 = vtanh.pop %v159
  %181 = vrot.lane.b32.xlu0 %v128, 32
  %v182 = vpop.permute.xlu0 %181
  %v184 = vmul.f32 %v178, %v182
  %186 = vrot.lane.b32.xlu0 %v179, 64
  %v187 = vpop.permute.xlu0 %186
  %v189 = vmul.f32 %v178, %v187
  %191 = vrot.lane.b32.xlu0 %v189, 32
  %v192 = vpop.permute.xlu0 %191
  %v194 = vadd.f32 %v184, %v192
  %v195 = vtanh.pop %v194
  %197 = vrot.lane.b32.xlu0 %v195, 64
  %v198 = vpop.permute.xlu0 %197
  %v200 = vmul.f32 %v178, %v198
  %202 = vrot.lane.b32.xlu0 %v200, 32
  %v203 = vpop.permute.xlu0 %202
  %205 = vst.msk [vmem:[%s4] sm:$0xff] %vm73, %v203
  %s206 = scalar_lea.vmem [#allocation4], 8
  %v207 = vld [vmem:[%s206] sm:$0xff]
  %v208 = vpack.c.bf16 %v200, %v200
  %210 = vrot.lane.b32.xlu0 %v208, 32
  %v211 = vpop.permute.xlu0 %210
  %v213 = vsel %vm73, %v211, 0
  %215 = vmatpush.bf16.msra.mxu0 0
  %216 = vmatpush.bf16.msra.mxu0 0
  %217 = vmatpush.bf16.msra.mxu0 0
  %218 = vmatpush.bf16.msra.mxu0 0
  %219 = vmatpush.bf16.msra.mxu0 0
  %220 = vmatpush.bf16.msra.mxu0 0
  %221 = vmatpush.bf16.msra.mxu0 %v140
  %222 = vmatpush.bf16.msra.mxu0 %v139
  %223 = vmatmul.bf16.gmra.mxu0 %v213
  %v224 = vpop.f32.mrf.mxu0
  %v225 = vadd.f32 0.0, %v224
  %v226 = vpop.f32.mrf.mxu0
  %227 = vdwg.mxu0
  %v228 = vadd.f32 %v207, %v225
  %v229 = vxor.u32 %v228, 2147483648
  %v230 = vmul.f32 %v229, 1.442695
  %v231 = vpow.pop %v230
  %v232 = vadd.f32 %v231, 1.0
  %v233 = vrcp.pop %v232
  %v234 = vmul.f32 %v232, %v233
  %v235 = vsub.f32 1.0, %v234
  %v236 = vmul.f32 %v233, %v235
  %v237 = vadd.f32 %v233, %v236
  %vm238 = vweird.f32 %v232
  %vm239 = vweird.f32 %v233
  %vm240 = vmor %vm238, %vm239
  %v241 = vsel %vm240, %v233, %v237
  %v242 = vand.u32 2147483647, %v232
  %vm243 = vcmp.eq.f32.partialorder %v242, 8.507059e+37
  %v244 = vand.u32 %v232, 2147483648
  %v245 = vor.u32 1.1754944e-38, %v244
  %v246 = vsel %vm243, %v245, %v241
  %v247 = vmul.f32 1.0, %v246
  %v248 = vtanh.pop %v228
  %v249 = vmul.f32 %v247, %v194
  %251 = vrot.lane.b32.xlu0 %v248, 64
  %v252 = vpop.permute.xlu0 %251
  %v254 = vmul.f32 %v247, %v252
  %256 = vrot.lane.b32.xlu0 %v254, 32
  %v257 = vpop.permute.xlu0 %256
  %v259 = vadd.f32 %v249, %v257
  %v260 = vtanh.pop %v259
  %262 = vrot.lane.b32.xlu0 %v260, 64
  %v263 = vpop.permute.xlu0 %262
  %v265 = vmul.f32 %v247, %v263
  %267 = vrot.lane.b32.xlu0 %v265, 32
  %v268 = vpop.permute.xlu0 %267
  %s270 = scalar_lea.vmem %s4, 8
  %271 = vst.msk [vmem:[%s270] sm:$0xff] %vm73, %v268
  %s272 = scalar_lea.vmem [#allocation4], 16
  %v273 = vld [vmem:[%s272] sm:$0xff]
  %v274 = vpack.c.bf16 %v265, %v265
  %276 = vrot.lane.b32.xlu0 %v274, 32
  %v277 = vpop.permute.xlu0 %276
  %v279 = vsel %vm73, %v277, 0
  %281 = vmatpush.bf16.msra.mxu0 0
  %282 = vmatpush.bf16.msra.mxu0 0
  %283 = vmatpush.bf16.msra.mxu0 0
  %284 = vmatpush.bf16.msra.mxu0 0
  %285 = vmatpush.bf16.msra.mxu0 0
  %286 = vmatpush.bf16.msra.mxu0 0
  %287 = vmatpush.bf16.msra.mxu0 %v140
  %288 = vmatpush.bf16.msra.mxu0 %v139
  %289 = vmatmul.bf16.gmra.mxu0 %v279
  %v290 = vpop.f32.mrf.mxu0
  %v291 = vadd.f32 0.0, %v290
  %v292 = vpop.f32.mrf.mxu0
  %293 = vdwg.mxu0
  %v294 = vadd.f32 %v273, %v291
  %v295 = vxor.u32 %v294, 2147483648
  %v296 = vmul.f32 %v295, 1.442695
  %v297 = vpow.pop %v296
  %v298 = vadd.f32 %v297, 1.0
  %v299 = vrcp.pop %v298
  %v300 = vmul.f32 %v298, %v299
  %v301 = vsub.f32 1.0, %v300
  %v302 = vmul.f32 %v299, %v301
  %v303 = vadd.f32 %v299, %v302
  %vm304 = vweird.f32 %v298
  %vm305 = vweird.f32 %v299
  %vm306 = vmor %vm304, %vm305
  %v307 = vsel %vm306, %v299, %v303
  %v308 = vand.u32 2147483647, %v298
  %vm309 = vcmp.eq.f32.partialorder %v308, 8.507059e+37
  %v310 = vand.u32 %v298, 2147483648
  %v311 = vor.u32 1.1754944e-38, %v310
  %v312 = vsel %vm309, %v311, %v307
  %v313 = vmul.f32 1.0, %v312
  %v314 = vtanh.pop %v294
  %v315 = vmul.f32 %v313, %v259
  %317 = vrot.lane.b32.xlu0 %v314, 64
  %v318 = vpop.permute.xlu0 %317
  %v320 = vmul.f32 %v313, %v318
  %322 = vrot.lane.b32.xlu0 %v320, 32
  %v323 = vpop.permute.xlu0 %322
  %v325 = vadd.f32 %v315, %v323
  %v326 = vtanh.pop %v325
  %328 = vrot.lane.b32.xlu0 %v326, 64
  %v329 = vpop.permute.xlu0 %328
  %v331 = vmul.f32 %v313, %v329
  %333 = vrot.lane.b32.xlu0 %v331, 32
  %v334 = vpop.permute.xlu0 %333
  %s336 = scalar_lea.vmem %s4, 16
  %337 = vst.msk [vmem:[%s336] sm:$0xff] %vm73, %v334
  %s338 = scalar_lea.vmem [#allocation4], 24
  %v339 = vld [vmem:[%s338] sm:$0xff]
  %v340 = vpack.c.bf16 %v331, %v331
  %342 = vrot.lane.b32.xlu0 %v340, 32
  %v343 = vpop.permute.xlu0 %342
  %v345 = vsel %vm73, %v343, 0
  %347 = vmatpush.bf16.msra.mxu0 0
  %348 = vmatpush.bf16.msra.mxu0 0
  %349 = vmatpush.bf16.msra.mxu0 0
  %350 = vmatpush.bf16.msra.mxu0 0
  %351 = vmatpush.bf16.msra.mxu0 0
  %352 = vmatpush.bf16.msra.mxu0 0
  %353 = vmatpush.bf16.msra.mxu0 %v140
  %354 = vmatpush.bf16.msra.mxu0 %v139
  %355 = vmatmul.bf16.gmra.mxu0 %v345
  %v356 = vpop.f32.mrf.mxu0
  %v357 = vadd.f32 0.0, %v356
  %v358 = vpop.f32.mrf.mxu0
  %359 = vdwg.mxu0
  %v360 = vadd.f32 %v339, %v357
  %v361 = vxor.u32 %v360, 2147483648
  %v362 = vmul.f32 %v361, 1.442695
  %v363 = vpow.pop %v362
  %v364 = vadd.f32 %v363, 1.0
  %v365 = vrcp.pop %v364
  %v366 = vmul.f32 %v364, %v365
  %v367 = vsub.f32 1.0, %v366
  %v368 = vmul.f32 %v365, %v367
  %v369 = vadd.f32 %v365, %v368
  %vm370 = vweird.f32 %v364
  %vm371 = vweird.f32 %v365
  %vm372 = vmor %vm370, %vm371
  %v373 = vsel %vm372, %v365, %v369
  %v374 = vand.u32 2147483647, %v364
  %vm375 = vcmp.eq.f32.partialorder %v374, 8.507059e+37
  %v376 = vand.u32 %v364, 2147483648
  %v377 = vor.u32 1.1754944e-38, %v376
  %v378 = vsel %vm375, %v377, %v373
  %v379 = vmul.f32 1.0, %v378
  %v380 = vtanh.pop %v360
  %v381 = vmul.f32 %v379, %v325
  %383 = vrot.lane.b32.xlu0 %v380, 64
  %v384 = vpop.permute.xlu0 %383
  %v386 = vmul.f32 %v379, %v384
  %388 = vrot.lane.b32.xlu0 %v386, 32
  %v389 = vpop.permute.xlu0 %388
  %v391 = vadd.f32 %v381, %v389
  %v392 = vtanh.pop %v391
  %394 = vrot.lane.b32.xlu0 %v392, 64
  %v395 = vpop.permute.xlu0 %394
  %v397 = vmul.f32 %v379, %v395
  %399 = vrot.lane.b32.xlu0 %v397, 32
  %v400 = vpop.permute.xlu0 %399
  %s402 = scalar_lea.vmem %s4, 24
  %403 = vst.msk [vmem:[%s402] sm:$0xff] %vm73, %v400
  %s404 = scalar_lea.vmem [#allocation4], 32
  %v405 = vld [vmem:[%s404] sm:$0xff]
  %v406 = vpack.c.bf16 %v397, %v397
  %408 = vrot.lane.b32.xlu0 %v406, 32
  %v409 = vpop.permute.xlu0 %408
  %v411 = vsel %vm73, %v409, 0
  %413 = vmatpush.bf16.msra.mxu0 0
  %414 = vmatpush.bf16.msra.mxu0 0
  %415 = vmatpush.bf16.msra.mxu0 0
  %416 = vmatpush.bf16.msra.mxu0 0
  %417 = vmatpush.bf16.msra.mxu0 0
  %418 = vmatpush.bf16.msra.mxu0 0
  %419 = vmatpush.bf16.msra.mxu0 %v140
  %420 = vmatpush.bf16.msra.mxu0 %v139
  %421 = vmatmul.bf16.gmra.mxu0 %v411
  %v422 = vpop.f32.mrf.mxu0
  %v423 = vadd.f32 0.0, %v422
  %v424 = vpop.f32.mrf.mxu0
  %425 = vdwg.mxu0
  %v426 = vadd.f32 %v405, %v423
  %v427 = vxor.u32 %v426, 2147483648
  %v428 = vmul.f32 %v427, 1.442695
  %v429 = vpow.pop %v428
  %v430 = vadd.f32 %v429, 1.0
  %v431 = vrcp.pop %v430
  %v432 = vmul.f32 %v430, %v431
  %v433 = vsub.f32 1.0, %v432
  %v434 = vmul.f32 %v431, %v433
  %v435 = vadd.f32 %v431, %v434
  %vm436 = vweird.f32 %v430
  %vm437 = vweird.f32 %v431
  %vm438 = vmor %vm436, %vm437
  %v439 = vsel %vm438, %v431, %v435
  %v440 = vand.u32 2147483647, %v430
  %vm441 = vcmp.eq.f32.partialorder %v440, 8.507059e+37
  %v442 = vand.u32 %v430, 2147483648
  %v443 = vor.u32 1.1754944e-38, %v442
  %v444 = vsel %vm441, %v443, %v439
  %v445 = vmul.f32 1.0, %v444
  %v446 = vtanh.pop %v426
  %v447 = vmul.f32 %v445, %v391
  %449 = vrot.lane.b32.xlu0 %v446, 64
  %v450 = vpop.permute.xlu0 %449
  %v452 = vmul.f32 %v445, %v450
  %454 = vrot.lane.b32.xlu0 %v452, 32
  %v455 = vpop.permute.xlu0 %454
  %v457 = vadd.f32 %v447, %v455
  %v458 = vtanh.pop %v457
  %460 = vrot.lane.b32.xlu0 %v458, 64
  %v461 = vpop.permute.xlu0 %460
  %v463 = vmul.f32 %v445, %v461
  %465 = vrot.lane.b32.xlu0 %v463, 32
  %v466 = vpop.permute.xlu0 %465
  %s468 = scalar_lea.vmem %s4, 32
  %469 = vst.msk [vmem:[%s468] sm:$0xff] %vm73, %v466
  %s470 = scalar_lea.vmem [#allocation4], 40
  %v471 = vld [vmem:[%s470] sm:$0xff]
  %v472 = vpack.c.bf16 %v463, %v463
  %474 = vrot.lane.b32.xlu0 %v472, 32
  %v475 = vpop.permute.xlu0 %474
  %v477 = vsel %vm73, %v475, 0
  %479 = vmatpush.bf16.msra.mxu0 0
  %480 = vmatpush.bf16.msra.mxu0 0
  %481 = vmatpush.bf16.msra.mxu0 0
  %482 = vmatpush.bf16.msra.mxu0 0
  %483 = vmatpush.bf16.msra.mxu0 0
  %484 = vmatpush.bf16.msra.mxu0 0
  %485 = vmatpush.bf16.msra.mxu0 %v140
  %486 = vmatpush.bf16.msra.mxu0 %v139
  %487 = vmatmul.bf16.gmra.mxu0 %v477
  %v488 = vpop.f32.mrf.mxu0
  %v489 = vadd.f32 0.0, %v488
  %v490 = vpop.f32.mrf.mxu0
  %491 = vdwg.mxu0
  %v492 = vadd.f32 %v471, %v489
  %v493 = vxor.u32 %v492, 2147483648
  %v494 = vmul.f32 %v493, 1.442695
  %v495 = vpow.pop %v494
  %v496 = vadd.f32 %v495, 1.0
  %v497 = vrcp.pop %v496
  %v498 = vmul.f32 %v496, %v497
  %v499 = vsub.f32 1.0, %v498
  %v500 = vmul.f32 %v497, %v499
  %v501 = vadd.f32 %v497, %v500
  %vm502 = vweird.f32 %v496
  %vm503 = vweird.f32 %v497
  %vm504 = vmor %vm502, %vm503
  %v505 = vsel %vm504, %v497, %v501
  %v506 = vand.u32 2147483647, %v496
  %vm507 = vcmp.eq.f32.partialorder %v506, 8.507059e+37
  %v508 = vand.u32 %v496, 2147483648
  %v509 = vor.u32 1.1754944e-38, %v508
  %v510 = vsel %vm507, %v509, %v505
  %v511 = vmul.f32 1.0, %v510
  %v512 = vtanh.pop %v492
  %v513 = vmul.f32 %v511, %v457
  %515 = vrot.lane.b32.xlu0 %v512, 64
  %v516 = vpop.permute.xlu0 %515
  %v518 = vmul.f32 %v511, %v516
  %520 = vrot.lane.b32.xlu0 %v518, 32
  %v521 = vpop.permute.xlu0 %520
  %v523 = vadd.f32 %v513, %v521
  %v524 = vtanh.pop %v523
  %526 = vrot.lane.b32.xlu0 %v524, 64
  %v527 = vpop.permute.xlu0 %526
  %v529 = vmul.f32 %v511, %v527
  %531 = vrot.lane.b32.xlu0 %v529, 32
  %v532 = vpop.permute.xlu0 %531
  %s534 = scalar_lea.vmem %s4, 40
  %535 = vst.msk [vmem:[%s534] sm:$0xff] %vm73, %v532
  %s536 = scalar_lea.vmem [#allocation4], 48
  %v537 = vld [vmem:[%s536] sm:$0xff]
  %v538 = vpack.c.bf16 %v529, %v529
  %540 = vrot.lane.b32.xlu0 %v538, 32
  %v541 = vpop.permute.xlu0 %540
  %v543 = vsel %vm73, %v541, 0
  %545 = vmatpush.bf16.msra.mxu0 0
  %546 = vmatpush.bf16.msra.mxu0 0
  %547 = vmatpush.bf16.msra.mxu0 0
  %548 = vmatpush.bf16.msra.mxu0 0
  %549 = vmatpush.bf16.msra.mxu0 0
  %550 = vmatpush.bf16.msra.mxu0 0
  %551 = vmatpush.bf16.msra.mxu0 %v140
  %552 = vmatpush.bf16.msra.mxu0 %v139
  %553 = vmatmul.bf16.gmra.mxu0 %v543
  %v554 = vpop.f32.mrf.mxu0
  %v555 = vadd.f32 0.0, %v554
  %v556 = vpop.f32.mrf.mxu0
  %557 = vdwg.mxu0
  %v558 = vadd.f32 %v537, %v555
  %v559 = vxor.u32 %v558, 2147483648
  %v560 = vmul.f32 %v559, 1.442695
  %v561 = vpow.pop %v560
  %v562 = vadd.f32 %v561, 1.0
  %v563 = vrcp.pop %v562
  %v564 = vmul.f32 %v562, %v563
  %v565 = vsub.f32 1.0, %v564
  %v566 = vmul.f32 %v563, %v565
  %v567 = vadd.f32 %v563, %v566
  %vm568 = vweird.f32 %v562
  %vm569 = vweird.f32 %v563
  %vm570 = vmor %vm568, %vm569
  %v571 = vsel %vm570, %v563, %v567
  %v572 = vand.u32 2147483647, %v562
  %vm573 = vcmp.eq.f32.partialorder %v572, 8.507059e+37
  %v574 = vand.u32 %v562, 2147483648
  %v575 = vor.u32 1.1754944e-38, %v574
  %v576 = vsel %vm573, %v575, %v571
  %v577 = vmul.f32 1.0, %v576
  %v578 = vtanh.pop %v558
  %v579 = vmul.f32 %v577, %v523
  %581 = vrot.lane.b32.xlu0 %v578, 64
  %v582 = vpop.permute.xlu0 %581
  %v584 = vmul.f32 %v577, %v582
  %586 = vrot.lane.b32.xlu0 %v584, 32
  %v587 = vpop.permute.xlu0 %586
  %v589 = vadd.f32 %v579, %v587
  %v590 = vtanh.pop %v589
  %592 = vrot.lane.b32.xlu0 %v590, 64
  %v593 = vpop.permute.xlu0 %592
  %v595 = vmul.f32 %v577, %v593
  %597 = vrot.lane.b32.xlu0 %v595, 32
  %v598 = vpop.permute.xlu0 %597
  %s600 = scalar_lea.vmem %s4, 48
  %601 = vst.msk [vmem:[%s600] sm:$0xff] %vm73, %v598
  %s602 = scalar_lea.vmem [#allocation4], 56
  %v603 = vld [vmem:[%s602] sm:$0xff]
  %v604 = vpack.c.bf16 %v595, %v595
  %606 = vrot.lane.b32.xlu0 %v604, 32
  %v607 = vpop.permute.xlu0 %606
  %v609 = vsel %vm73, %v607, 0
  %611 = vmatpush.bf16.msra.mxu0 0
  %612 = vmatpush.bf16.msra.mxu0 0
  %613 = vmatpush.bf16.msra.mxu0 0
  %614 = vmatpush.bf16.msra.mxu0 0
  %615 = vmatpush.bf16.msra.mxu0 0
  %616 = vmatpush.bf16.msra.mxu0 0
  %617 = vmatpush.bf16.msra.mxu0 %v140
  %618 = vmatpush.bf16.msra.mxu0 %v139
  %619 = vmatmul.bf16.gmra.mxu0 %v609
  %v620 = vpop.f32.mrf.mxu0
  %v621 = vadd.f32 0.0, %v620
  %v622 = vpop.f32.mrf.mxu0
  %623 = vdwg.mxu0
  %v624 = vadd.f32 %v603, %v621
  %v625 = vxor.u32 %v624, 2147483648
  %v626 = vmul.f32 %v625, 1.442695
  %v627 = vpow.pop %v626
  %v628 = vadd.f32 %v627, 1.0
  %v629 = vrcp.pop %v628
  %v630 = vmul.f32 %v628, %v629
  %v631 = vsub.f32 1.0, %v630
  %v632 = vmul.f32 %v629, %v631
  %v633 = vadd.f32 %v629, %v632
  %vm634 = vweird.f32 %v628
  %vm635 = vweird.f32 %v629
  %vm636 = vmor %vm634, %vm635
  %v637 = vsel %vm636, %v629, %v633
  %v638 = vand.u32 2147483647, %v628
  %vm639 = vcmp.eq.f32.partialorder %v638, 8.507059e+37
  %v640 = vand.u32 %v628, 2147483648
  %v641 = vor.u32 1.1754944e-38, %v640
  %v642 = vsel %vm639, %v641, %v637
  %v643 = vmul.f32 1.0, %v642
  %v644 = vtanh.pop %v624
  %v645 = vmul.f32 %v643, %v589
  %647 = vrot.lane.b32.xlu0 %v644, 64
  %v648 = vpop.permute.xlu0 %647
  %v650 = vmul.f32 %v643, %v648
  %652 = vrot.lane.b32.xlu0 %v650, 32
  %v653 = vpop.permute.xlu0 %652
  %v655 = vadd.f32 %v645, %v653
  %v656 = vtanh.pop %v655
  %658 = vrot.lane.b32.xlu0 %v656, 64
  %v659 = vpop.permute.xlu0 %658
  %v661 = vmul.f32 %v643, %v659
  %663 = vrot.lane.b32.xlu0 %v661, 32
  %v664 = vpop.permute.xlu0 %663
  %s666 = scalar_lea.vmem %s4, 56
  %667 = vst.msk [vmem:[%s666] sm:$0xff] %vm73, %v664
  %668 = vst.msk [vmem:[#allocation2] sm:$0xff] %vm73, %v664
  %670 = vrot.lane.b32.xlu0 %v655, 96
  %v671 = vpop.permute.xlu0 %670
  %673 = vst.msk [vmem:[#allocation3] sm:$0xff] %vm73, %v671
  // Predicated region
  $region22: #{my_rnn_forward.1} parent=0 // pred_check
    _
  $region23: #{my_rnn_forward.1} parent=0 // pred_check_branch
    %675 = sbr.rel (0) target = $region25
  $region24: #{my_rnn_forward.1} parent=0 // pred_region
    _
  $region25: #{my_rnn_forward.1} parent=0 // pred_fallthru
    _
  // Predicated region
  $region26: #{my_rnn_forward.1} parent=0 // pred_check
    _
  $region27: #{my_rnn_forward.1} parent=0 // pred_check_branch
    %677 = sbr.rel (0) target = $region29
  $region28: #{my_rnn_forward.1} parent=0 // pred_region
    _
  $region29: #{my_rnn_forward.1} parent=0 // pred_fallthru
    _

</llo_original>
